<compile_context>
chip_gen: v7x
topology: tpu7x:2x2x1
jax: 0.10.0
libtpu: 0.0.40
codegen_flags: <defaults>
</compile_context>

<pallas_src>
import jax
import jax.numpy as jnp
from jax.experimental import pallas as pl
from jax.experimental.pallas import tpu as pltpu

NEG_SLOPE = 0.01  # F.leaky_relu default negative_slope
LANE = 128


def _lrelu(v):
    # max(v, a*v) == leaky_relu(v) for 0 < a < 1; single VPU max vs cmp+select.
    return jnp.maximum(v, NEG_SLOPE * v)


def _round_up(n, m=LANE):
    return ((n + m - 1) // m) * m


def _pad_axis(a, target, axis):
    pad = target - a.shape[axis]
    if pad <= 0:
        return a
    widths = [(0, 0)] * a.ndim
    widths[axis] = (0, pad)
    return jnp.pad(a, widths)


def mlpsum_kernel(x_ref,
                  w1_ref, b1_ref, w2_ref, b2_ref, w3_ref, b3_ref,
                  p1_ref, pb1_ref, p2_ref, pb2_ref, p3_ref, pb3_ref,
                  out_ref, feat_ref):
    TB, N, Dp = x_ref.shape

    # TODO(synk): nn.Dropout(p=0) is the identity; nonzero-p training-mode
    # dropout would need pltpu.prng_seed / prng_random_bits here.

    # Collapse (TB, N, Dp) -> (TB*N, Dp): lin1/lin2 run as single big MXU
    # matmuls (M = TB*N rows) rather than per-batch 8-row dot_generals.
    x2 = x_ref[...].reshape(TB * N, Dp)                               # bf16
    h = _lrelu(jnp.dot(x2, w1_ref[...],
                       preferred_element_type=jnp.float32) + b1_ref[...])
    h = _lrelu(jnp.dot(h.astype(w2_ref.dtype), w2_ref[...],
                       preferred_element_type=jnp.float32) + b2_ref[...])

    # torch.sum(x, 1, keepdim=True).view(B, -1)  ->  (TB, H1)
    # TODO(synk): for very large N express this as ones(1,N) @ h on the MXU;
    # at N=8 the XLU cross-sublane reduce is free.
    s = jnp.sum(h.reshape(TB, N, h.shape[-1]), axis=1)

    # lin3 -> features
    feats = _lrelu(jnp.dot(s.astype(w3_ref.dtype), w3_ref[...],
                           preferred_element_type=jnp.float32) + b3_ref[...])
    feat_ref[...] = feats.astype(feat_ref.dtype)

    # proj1 / proj2 / proj3
    y = _lrelu(jnp.dot(feats.astype(p1_ref.dtype), p1_ref[...],
                       preferred_element_type=jnp.float32) + pb1_ref[...])
    y = _lrelu(jnp.dot(y.astype(p2_ref.dtype), p2_ref[...],
                       preferred_element_type=jnp.float32) + pb2_ref[...])
    y = _lrelu(jnp.dot(y.astype(p3_ref.dtype), p3_ref[...],
                       preferred_element_type=jnp.float32) + pb3_ref[...])
    out_ref[...] = y.astype(out_ref.dtype)


def init_params(key, input_dim, latent_dim, output_dim, k):
    """Deterministic PyTorch-style (uniform +-1/sqrt(fan_in)) Linear init.

    Weights are stored transposed vs. PyTorch: (in_features, out_features),
    so every layer is a plain `x @ W + b`. Biases are (1, out_features).
    """
    h1 = int(256 // k)
    h2 = int(128 // k)
    dims = [
        (input_dim, h1),      # lin1
        (h1, h1),             # lin2
        (h1, latent_dim),     # lin3
        (latent_dim, h2),     # proj1
        (h2, h2),             # proj2
        (h2, output_dim),     # proj3
    ]
    params = []
    for (fan_in, fan_out) in dims:
        key, kw, kb = jax.random.split(key, 3)
        bound = 1.0 / jnp.sqrt(jnp.float32(fan_in))
        w = jax.random.uniform(kw, (fan_in, fan_out), jnp.float32, -bound, bound)
        b = jax.random.uniform(kb, (1, fan_out), jnp.float32, -bound, bound)
        params += [w, b]
    return params


def mlpsum_forward(x, params, *, batch_tile=128, compute_dtype=jnp.bfloat16):
    B, N, input_dim = x.shape
    (w1, b1, w2, b2, w3, b3, p1, pb1, p2, pb2, p3, pb3) = params
    latent_dim = b3.shape[-1]
    output_dim = pb3.shape[-1]

    # Zero-pad every feature dim up to a multiple of 128 so all matmuls / the
    # output stores run on full-lane, unmasked tiles. Padded rows/cols are
    # zero, so they never contribute; padded output columns are sliced off.
    def pad_w(w):
        wp = _pad_axis(_pad_axis(w, _round_up(w.shape[0]), 0),
                       _round_up(w.shape[1]), 1)
        return wp.astype(compute_dtype)

    def pad_b(b):
        return _pad_axis(b, _round_up(b.shape[-1]), -1).astype(jnp.float32)

    Dp = _round_up(input_dim)
    xp = _pad_axis(x, Dp, -1).astype(compute_dtype)

    padded = [pad_w(w1), pad_b(b1), pad_w(w2), pad_b(b2), pad_w(w3), pad_b(b3),
              pad_w(p1), pad_b(pb1), pad_w(p2), pad_b(pb2), pad_w(p3), pad_b(pb3)]

    H1 = padded[0].shape[-1]   # padded lin1/lin2 width
    Lp = padded[5].shape[-1]   # padded latent width
    H2 = padded[7].shape[-1]   # padded proj width
    Op = padded[11].shape[-1]  # padded output width

    # Batch tiling: block second-minor dims must be a multiple of 8 unless
    # they span the full array, so use TB = B for small batches and a
    # multiple-of-8 tile (default 128) for larger ones.
    TB = B if B <= batch_tile else batch_tile
    grid = (pl.cdiv(B, TB),)

    x_spec = pl.BlockSpec((TB, N, Dp), lambda i: (i, 0, 0))
    # Weights/biases: full-array blocks with a constant index_map -> loaded
    # once, resident in VMEM across all grid steps.
    w_specs = [pl.BlockSpec(p.shape, lambda i: (0, 0)) for p in padded]
    out_specs = (pl.BlockSpec((TB, Op), lambda i: (i, 0)),
                 pl.BlockSpec((TB, Lp), lambda i: (i, 0)))
    out_shape = (jax.ShapeDtypeStruct((B, Op), jnp.float32),
                 jax.ShapeDtypeStruct((B, Lp), jnp.float32))

    flops = (2 * B * N * (Dp * H1 + H1 * H1)
             + 2 * B * (H1 * Lp + Lp * H2 + H2 * H2 + H2 * Op))
    bytes_accessed = (xp.size * xp.dtype.itemsize
                      + sum(p.size * p.dtype.itemsize for p in padded)
                      + (B * Op + B * Lp) * 4)

    out_p, feats_p = pl.pallas_call(
        mlpsum_kernel,
        out_shape=out_shape,
        grid_spec=pltpu.PrefetchScalarGridSpec(
            num_scalar_prefetch=0,
            grid=grid,
            in_specs=[x_spec] + w_specs,
            out_specs=out_specs,
        ),
        compiler_params=pltpu.CompilerParams(
            dimension_semantics=("parallel",),   # shard batch tiles across TCs
            vmem_limit_bytes=64 << 20,
        ),
        cost_estimate=pl.CostEstimate(flops=flops, transcendentals=0,
                                      bytes_accessed=bytes_accessed),
    )(xp, *padded)

    return out_p[:, :output_dim], feats_p[:, :latent_dim]


def mlpsum_reference(x, params):
    (w1, b1, w2, b2, w3, b3, p1, pb1, p2, pb2, p3, pb3) = params
    h = _lrelu(jnp.einsum('bnd,dh->bnh', x, w1) + b1)
    h = _lrelu(jnp.einsum('bnh,hk->bnk', h, w2) + b2)
    s = jnp.sum(h, axis=1)
    feats = _lrelu(s @ w3 + b3)
    y = _lrelu(feats @ p1 + pb1)
    y = _lrelu(y @ p2 + pb2)
    y = _lrelu(y @ p3 + pb3)
    return y, feats


if __name__ == "__main__":
    # Small, module-consistent configuration.
    B, N = 2, 8
    input_dim, latent_dim, output_dim, k = 32, 128, 64, 2

    key = jax.random.PRNGKey(0)
    key, kx = jax.random.split(key)
    x = jax.random.normal(kx, (B, N, input_dim), jnp.float32)

    params = init_params(key, input_dim, latent_dim, output_dim, k)

    out, feats = mlpsum_forward(x, params)
    jax.block_until_ready((out, feats))

    ref_out, ref_feats = mlpsum_reference(x, params)
    assert out.shape == (B, output_dim) and feats.shape == (B, latent_dim)
    assert jnp.allclose(out, ref_out, rtol=2e-2, atol=2e-2)
    assert jnp.allclose(feats, ref_feats, rtol=2e-2, atol=2e-2)

    print("KERNEL_OK")
</pallas_src>

<mosaic_0001>
module attributes {stable_mosaic.version = 11 : i64} {
  func.func @mlpsum_kernel(%arg0: i32, %arg1: memref<2x8x128xbf16, #tpu.memory_space<vmem>>, %arg2: memref<128x128xbf16, #tpu.memory_space<vmem>>, %arg3: memref<1x128xf32, #tpu.memory_space<vmem>>, %arg4: memref<128x128xbf16, #tpu.memory_space<vmem>>, %arg5: memref<1x128xf32, #tpu.memory_space<vmem>>, %arg6: memref<128x128xbf16, #tpu.memory_space<vmem>>, %arg7: memref<1x128xf32, #tpu.memory_space<vmem>>, %arg8: memref<128x128xbf16, #tpu.memory_space<vmem>>, %arg9: memref<1x128xf32, #tpu.memory_space<vmem>>, %arg10: memref<128x128xbf16, #tpu.memory_space<vmem>>, %arg11: memref<1x128xf32, #tpu.memory_space<vmem>>, %arg12: memref<128x128xbf16, #tpu.memory_space<vmem>>, %arg13: memref<1x128xf32, #tpu.memory_space<vmem>>, %arg14: memref<2x128xf32, #tpu.memory_space<vmem>>, %arg15: memref<2x128xf32, #tpu.memory_space<vmem>>) attributes {dimension_semantics = [#tpu.dimension_semantics<parallel>], iteration_bounds = array<i64: 1>, scalar_prefetch = 0 : i64, scratch_operands = 0 : i64, tpu.core_type = #tpu.core_type<tc>, window_params = [{transform_indices = @transform_0, window_bounds = array<i64: 2, 8, 128>}, {pipeline_mode = #tpu.pipeline_mode<synchronous>, transform_indices = @transform_1, window_bounds = array<i64: 128, 128>}, {pipeline_mode = #tpu.pipeline_mode<synchronous>, transform_indices = @transform_2, window_bounds = array<i64: 1, 128>}, {pipeline_mode = #tpu.pipeline_mode<synchronous>, transform_indices = @transform_3, window_bounds = array<i64: 128, 128>}, {pipeline_mode = #tpu.pipeline_mode<synchronous>, transform_indices = @transform_4, window_bounds = array<i64: 1, 128>}, {pipeline_mode = #tpu.pipeline_mode<synchronous>, transform_indices = @transform_5, window_bounds = array<i64: 128, 128>}, {pipeline_mode = #tpu.pipeline_mode<synchronous>, transform_indices = @transform_6, window_bounds = array<i64: 1, 128>}, {pipeline_mode = #tpu.pipeline_mode<synchronous>, transform_indices = @transform_7, window_bounds = array<i64: 128, 128>}, {pipeline_mode = #tpu.pipeline_mode<synchronous>, transform_indices = @transform_8, window_bounds = array<i64: 1, 128>}, {pipeline_mode = #tpu.pipeline_mode<synchronous>, transform_indices = @transform_9, window_bounds = array<i64: 128, 128>}, {pipeline_mode = #tpu.pipeline_mode<synchronous>, transform_indices = @transform_10, window_bounds = array<i64: 1, 128>}, {pipeline_mode = #tpu.pipeline_mode<synchronous>, transform_indices = @transform_11, window_bounds = array<i64: 128, 128>}, {pipeline_mode = #tpu.pipeline_mode<synchronous>, transform_indices = @transform_12, window_bounds = array<i64: 1, 128>}, {transform_indices = @transform_13, window_bounds = array<i64: 2, 128>}, {transform_indices = @transform_14, window_bounds = array<i64: 2, 128>}]} {
    %c0 = arith.constant 0 : index
    %c0_0 = arith.constant 0 : index
    %c0_1 = arith.constant 0 : index
    %0 = vector.load %arg1[%c0, %c0_0, %c0_1] : memref<2x8x128xbf16, #tpu.memory_space<vmem>>, vector<2x8x128xbf16>
    %1 = vector.shape_cast %0 : vector<2x8x128xbf16> to vector<16x128xbf16>
    %c0_2 = arith.constant 0 : index
    %c0_3 = arith.constant 0 : index
    %2 = vector.load %arg2[%c0_2, %c0_3] : memref<128x128xbf16, #tpu.memory_space<vmem>>, vector<128x128xbf16>
    %cst = arith.constant dense<0.000000e+00> : vector<16x128xf32>
    %3 = tpu.matmul %1, %2, %cst {dimension_numbers = #tpu.dot_dimension_numbers<[1], [0], [0], [1], [0, 0, 1, 1], [], []>} : vector<16x128xbf16>, vector<128x128xbf16>, vector<16x128xf32> -> vector<16x128xf32>
    %c0_4 = arith.constant 0 : index
    %c0_5 = arith.constant 0 : index
    %4 = vector.load %arg3[%c0_4, %c0_5] : memref<1x128xf32, #tpu.memory_space<vmem>>, vector<1x128xf32>
    %5 = vector.broadcast %4 : vector<1x128xf32> to vector<16x128xf32>
    %6 = arith.addf %3, %5 : vector<16x128xf32>
    %cst_6 = arith.constant 0.00999999977 : f32
    %7 = vector.broadcast %cst_6 : f32 to vector<16x128xf32>
    %8 = arith.mulf %7, %6 : vector<16x128xf32>
    %9 = arith.maximumf %6, %8 : vector<16x128xf32>
    %10 = arith.truncf %9 : vector<16x128xf32> to vector<16x128xbf16>
    %c0_7 = arith.constant 0 : index
    %c0_8 = arith.constant 0 : index
    %11 = vector.load %arg4[%c0_7, %c0_8] : memref<128x128xbf16, #tpu.memory_space<vmem>>, vector<128x128xbf16>
    %cst_9 = arith.constant dense<0.000000e+00> : vector<16x128xf32>
    %12 = tpu.matmul %10, %11, %cst_9 {dimension_numbers = #tpu.dot_dimension_numbers<[1], [0], [0], [1], [0, 0, 1, 1], [], []>} : vector<16x128xbf16>, vector<128x128xbf16>, vector<16x128xf32> -> vector<16x128xf32>
    %c0_10 = arith.constant 0 : index
    %c0_11 = arith.constant 0 : index
    %13 = vector.load %arg5[%c0_10, %c0_11] : memref<1x128xf32, #tpu.memory_space<vmem>>, vector<1x128xf32>
    %14 = vector.broadcast %13 : vector<1x128xf32> to vector<16x128xf32>
    %15 = arith.addf %12, %14 : vector<16x128xf32>
    %cst_12 = arith.constant 0.00999999977 : f32
    %16 = vector.broadcast %cst_12 : f32 to vector<16x128xf32>
    %17 = arith.mulf %16, %15 : vector<16x128xf32>
    %18 = arith.maximumf %15, %17 : vector<16x128xf32>
    %19 = vector.shape_cast %18 : vector<16x128xf32> to vector<2x8x128xf32>
    %cst_13 = arith.constant dense<0.000000e+00> : vector<2x128xf32>
    %20 = vector.multi_reduction <add>, %19, %cst_13 [1] : vector<2x8x128xf32> to vector<2x128xf32>
    %21 = arith.truncf %20 : vector<2x128xf32> to vector<2x128xbf16>
    %c0_14 = arith.constant 0 : index
    %c0_15 = arith.constant 0 : index
    %22 = vector.load %arg6[%c0_14, %c0_15] : memref<128x128xbf16, #tpu.memory_space<vmem>>, vector<128x128xbf16>
    %cst_16 = arith.constant dense<0.000000e+00> : vector<2x128xf32>
    %23 = tpu.matmul %21, %22, %cst_16 {dimension_numbers = #tpu.dot_dimension_numbers<[1], [0], [0], [1], [0, 0, 1, 1], [], []>} : vector<2x128xbf16>, vector<128x128xbf16>, vector<2x128xf32> -> vector<2x128xf32>
    %c0_17 = arith.constant 0 : index
    %c0_18 = arith.constant 0 : index
    %24 = vector.load %arg7[%c0_17, %c0_18] : memref<1x128xf32, #tpu.memory_space<vmem>>, vector<1x128xf32>
    %25 = vector.broadcast %24 : vector<1x128xf32> to vector<2x128xf32>
    %26 = arith.addf %23, %25 : vector<2x128xf32>
    %cst_19 = arith.constant 0.00999999977 : f32
    %27 = vector.broadcast %cst_19 : f32 to vector<2x128xf32>
    %28 = arith.mulf %27, %26 : vector<2x128xf32>
    %29 = arith.maximumf %26, %28 : vector<2x128xf32>
    %c0_20 = arith.constant 0 : index
    %c0_21 = arith.constant 0 : index
    %30 = vector.load %arg15[%c0_20, %c0_21] : memref<2x128xf32, #tpu.memory_space<vmem>>, vector<2x128xf32>
    tpu.vector_store %arg15[%c0_20, %c0_21], %29 {strides = array<i32>} : memref<2x128xf32, #tpu.memory_space<vmem>>, vector<2x128xf32>,
    %31 = arith.truncf %29 : vector<2x128xf32> to vector<2x128xbf16>
    %c0_22 = arith.constant 0 : index
    %c0_23 = arith.constant 0 : index
    %32 = vector.load %arg8[%c0_22, %c0_23] : memref<128x128xbf16, #tpu.memory_space<vmem>>, vector<128x128xbf16>
    %cst_24 = arith.constant dense<0.000000e+00> : vector<2x128xf32>
    %33 = tpu.matmul %31, %32, %cst_24 {dimension_numbers = #tpu.dot_dimension_numbers<[1], [0], [0], [1], [0, 0, 1, 1], [], []>} : vector<2x128xbf16>, vector<128x128xbf16>, vector<2x128xf32> -> vector<2x128xf32>
    %c0_25 = arith.constant 0 : index
    %c0_26 = arith.constant 0 : index
    %34 = vector.load %arg9[%c0_25, %c0_26] : memref<1x128xf32, #tpu.memory_space<vmem>>, vector<1x128xf32>
    %35 = vector.broadcast %34 : vector<1x128xf32> to vector<2x128xf32>
    %36 = arith.addf %33, %35 : vector<2x128xf32>
    %cst_27 = arith.constant 0.00999999977 : f32
    %37 = vector.broadcast %cst_27 : f32 to vector<2x128xf32>
    %38 = arith.mulf %37, %36 : vector<2x128xf32>
    %39 = arith.maximumf %36, %38 : vector<2x128xf32>
    %40 = arith.truncf %39 : vector<2x128xf32> to vector<2x128xbf16>
    %c0_28 = arith.constant 0 : index
    %c0_29 = arith.constant 0 : index
    %41 = vector.load %arg10[%c0_28, %c0_29] : memref<128x128xbf16, #tpu.memory_space<vmem>>, vector<128x128xbf16>
    %cst_30 = arith.constant dense<0.000000e+00> : vector<2x128xf32>
    %42 = tpu.matmul %40, %41, %cst_30 {dimension_numbers = #tpu.dot_dimension_numbers<[1], [0], [0], [1], [0, 0, 1, 1], [], []>} : vector<2x128xbf16>, vector<128x128xbf16>, vector<2x128xf32> -> vector<2x128xf32>
    %c0_31 = arith.constant 0 : index
    %c0_32 = arith.constant 0 : index
    %43 = vector.load %arg11[%c0_31, %c0_32] : memref<1x128xf32, #tpu.memory_space<vmem>>, vector<1x128xf32>
    %44 = vector.broadcast %43 : vector<1x128xf32> to vector<2x128xf32>
    %45 = arith.addf %42, %44 : vector<2x128xf32>
    %cst_33 = arith.constant 0.00999999977 : f32
    %46 = vector.broadcast %cst_33 : f32 to vector<2x128xf32>
    %47 = arith.mulf %46, %45 : vector<2x128xf32>
    %48 = arith.maximumf %45, %47 : vector<2x128xf32>
    %49 = arith.truncf %48 : vector<2x128xf32> to vector<2x128xbf16>
    %c0_34 = arith.constant 0 : index
    %c0_35 = arith.constant 0 : index
    %50 = vector.load %arg12[%c0_34, %c0_35] : memref<128x128xbf16, #tpu.memory_space<vmem>>, vector<128x128xbf16>
    %cst_36 = arith.constant dense<0.000000e+00> : vector<2x128xf32>
    %51 = tpu.matmul %49, %50, %cst_36 {dimension_numbers = #tpu.dot_dimension_numbers<[1], [0], [0], [1], [0, 0, 1, 1], [], []>} : vector<2x128xbf16>, vector<128x128xbf16>, vector<2x128xf32> -> vector<2x128xf32>
    %c0_37 = arith.constant 0 : index
    %c0_38 = arith.constant 0 : index
    %52 = vector.load %arg13[%c0_37, %c0_38] : memref<1x128xf32, #tpu.memory_space<vmem>>, vector<1x128xf32>
    %53 = vector.broadcast %52 : vector<1x128xf32> to vector<2x128xf32>
    %54 = arith.addf %51, %53 : vector<2x128xf32>
    %cst_39 = arith.constant 0.00999999977 : f32
    %55 = vector.broadcast %cst_39 : f32 to vector<2x128xf32>
    %56 = arith.mulf %55, %54 : vector<2x128xf32>
    %57 = arith.maximumf %54, %56 : vector<2x128xf32>
    %c0_40 = arith.constant 0 : index
    %c0_41 = arith.constant 0 : index
    %58 = vector.load %arg14[%c0_40, %c0_41] : memref<2x128xf32, #tpu.memory_space<vmem>>, vector<2x128xf32>
    tpu.vector_store %arg14[%c0_40, %c0_41], %57 {strides = array<i32>} : memref<2x128xf32, #tpu.memory_space<vmem>>, vector<2x128xf32>,
    return
  }
  func.func @transform_0(%arg0: i32) -> (i32, i32, i32) {
    %c0_i32 = arith.constant 0 : i32
    %c0_i32_0 = arith.constant 0 : i32
    %c0_i32_1 = arith.constant 0 : i32
    return %arg0, %c0_i32, %c0_i32_0 : i32, i32, i32
  }
  func.func @transform_1(%arg0: i32) -> (i32, i32) {
    %c0_i32 = arith.constant 0 : i32
    %c0_i32_0 = arith.constant 0 : i32
    %c0_i32_1 = arith.constant 0 : i32
    return %c0_i32, %c0_i32_0 : i32, i32
  }
  func.func @transform_2(%arg0: i32) -> (i32, i32) {
    %c0_i32 = arith.constant 0 : i32
    %c0_i32_0 = arith.constant 0 : i32
    %c0_i32_1 = arith.constant 0 : i32
    return %c0_i32, %c0_i32_0 : i32, i32
  }
  func.func @transform_3(%arg0: i32) -> (i32, i32) {
    %c0_i32 = arith.constant 0 : i32
    %c0_i32_0 = arith.constant 0 : i32
    %c0_i32_1 = arith.constant 0 : i32
    return %c0_i32, %c0_i32_0 : i32, i32
  }
  func.func @transform_4(%arg0: i32) -> (i32, i32) {
    %c0_i32 = arith.constant 0 : i32
    %c0_i32_0 = arith.constant 0 : i32
    %c0_i32_1 = arith.constant 0 : i32
    return %c0_i32, %c0_i32_0 : i32, i32
  }
  func.func @transform_5(%arg0: i32) -> (i32, i32) {
    %c0_i32 = arith.constant 0 : i32
    %c0_i32_0 = arith.constant 0 : i32
    %c0_i32_1 = arith.constant 0 : i32
    return %c0_i32, %c0_i32_0 : i32, i32
  }
  func.func @transform_6(%arg0: i32) -> (i32, i32) {
    %c0_i32 = arith.constant 0 : i32
    %c0_i32_0 = arith.constant 0 : i32
    %c0_i32_1 = arith.constant 0 : i32
    return %c0_i32, %c0_i32_0 : i32, i32
  }
  func.func @transform_7(%arg0: i32) -> (i32, i32) {
    %c0_i32 = arith.constant 0 : i32
    %c0_i32_0 = arith.constant 0 : i32
    %c0_i32_1 = arith.constant 0 : i32
    return %c0_i32, %c0_i32_0 : i32, i32
  }
  func.func @transform_8(%arg0: i32) -> (i32, i32) {
    %c0_i32 = arith.constant 0 : i32
    %c0_i32_0 = arith.constant 0 : i32
    %c0_i32_1 = arith.constant 0 : i32
    return %c0_i32, %c0_i32_0 : i32, i32
  }
  func.func @transform_9(%arg0: i32) -> (i32, i32) {
    %c0_i32 = arith.constant 0 : i32
    %c0_i32_0 = arith.constant 0 : i32
    %c0_i32_1 = arith.constant 0 : i32
    return %c0_i32, %c0_i32_0 : i32, i32
  }
  func.func @transform_10(%arg0: i32) -> (i32, i32) {
    %c0_i32 = arith.constant 0 : i32
    %c0_i32_0 = arith.constant 0 : i32
    %c0_i32_1 = arith.constant 0 : i32
    return %c0_i32, %c0_i32_0 : i32, i32
  }
  func.func @transform_11(%arg0: i32) -> (i32, i32) {
    %c0_i32 = arith.constant 0 : i32
    %c0_i32_0 = arith.constant 0 : i32
    %c0_i32_1 = arith.constant 0 : i32
    return %c0_i32, %c0_i32_0 : i32, i32
  }
  func.func @transform_12(%arg0: i32) -> (i32, i32) {
    %c0_i32 = arith.constant 0 : i32
    %c0_i32_0 = arith.constant 0 : i32
    %c0_i32_1 = arith.constant 0 : i32
    return %c0_i32, %c0_i32_0 : i32, i32
  }
  func.func @transform_13(%arg0: i32) -> (i32, i32) {
    %c0_i32 = arith.constant 0 : i32
    %c0_i32_0 = arith.constant 0 : i32
    return %arg0, %c0_i32 : i32, i32
  }
  func.func @transform_14(%arg0: i32) -> (i32, i32) {
    %c0_i32 = arith.constant 0 : i32
    %c0_i32_0 = arith.constant 0 : i32
    return %arg0, %c0_i32 : i32, i32
  }
}

</mosaic_0001>

<llo_original>
// kernel: tpu_custom_call.1
$region0: #{tpu_custom_call.1}
  #allocation0 [shape = 'u32[]', space=smem, size = 0x4, offset = 0x4, fixed_abs, tag = 'smem constant byte address 0x4 - core index']
  #allocation1 [shape = 'u32[144,128]{1,0:T(1,128)}', space=vmem, size = 0x12000, scoped, tag = 'internal scratch']
  %s0 = inlined_call_operand.hbm [shape: bf16[2,8,128], index: 0, kind: input, shape index: {}]
  %s1 = inlined_call_operand.hbm [shape: bf16[128,128], index: 1, kind: input, shape index: {}]
  %s2 = inlined_call_operand.hbm [shape: f32[1,128], index: 2, kind: input, shape index: {}]
  %s3 = inlined_call_operand.hbm [shape: bf16[128,128], index: 3, kind: input, shape index: {}]
  %s4 = inlined_call_operand.hbm [shape: f32[1,128], index: 4, kind: input, shape index: {}]
  %s5 = inlined_call_operand.hbm [shape: bf16[128,128], index: 5, kind: input, shape index: {}]
  %s6 = inlined_call_operand.hbm [shape: f32[1,128], index: 6, kind: input, shape index: {}]
  %s7 = inlined_call_operand.hbm [shape: bf16[128,128], index: 7, kind: input, shape index: {}]
  %s8 = inlined_call_operand.hbm [shape: f32[1,128], index: 8, kind: input, shape index: {}]
  %s9 = inlined_call_operand.hbm [shape: bf16[128,128], index: 9, kind: input, shape index: {}]
  %s10 = inlined_call_operand.hbm [shape: f32[1,128], index: 10, kind: input, shape index: {}]
  %s11 = inlined_call_operand.hbm [shape: bf16[128,128], index: 11, kind: input, shape index: {}]
  %s12 = inlined_call_operand.hbm [shape: f32[1,128], index: 12, kind: input, shape index: {}]
  %s13 = inlined_call_operand.hbm [shape: f32[2,128], index: 13, kind: output, shape index: {0}]
  %s14 = inlined_call_operand.hbm [shape: f32[2,128], index: 14, kind: output, shape index: {1}]
  %15 = xla_tuple %s13, %s14
  %s16 = sld [smem:[#allocation0]]
  $region122: #{tpu_custom_call.1} parent=0
    _
  %s18 = ssub.s32 1, %s16
  %s19 = scalar_select 0, %s18, %s16
  $region1: #{tpu_custom_call.1} parent=0
    #allocation2 [shape = 'u8[4096]{0}', space=vmem, size = 0x1000, scoped, tag = 'input window, operand 0, single buffered']
    #allocation3 [shape = 's32[1]{0}', space=sflag, size = 0x4, scoped, tag = 'scoped memory for tpu_custom_call.1']
    #allocation4 [shape = 's32[1]{0}', space=sflag, size = 0x4, scoped, tag = 'scoped memory for tpu_custom_call.1']
    #allocation5 [shape = 'u8[32768]{0}', space=vmem, size = 0x8000, scoped, tag = 'input window, operand 1, single buffered']
    #allocation6 [shape = 's32[1]{0}', space=sflag, size = 0x4, scoped, tag = 'scoped memory for tpu_custom_call.1']
    #allocation7 [shape = 'u8[512]{0}', space=vmem, size = 0x400, scoped, tag = 'input window, operand 2, single buffered']
    #allocation8 [shape = 'u8[32768]{0}', space=vmem, size = 0x8000, scoped, tag = 'input window, operand 3, single buffered']
    #allocation9 [shape = 's32[1]{0}', space=sflag, size = 0x4, scoped, tag = 'scoped memory for tpu_custom_call.1']
    #allocation10 [shape = 'u8[512]{0}', space=vmem, size = 0x400, scoped, tag = 'input window, operand 4, single buffered']
    #allocation11 [shape = 'u8[32768]{0}', space=vmem, size = 0x8000, scoped, tag = 'input window, operand 5, single buffered']
    #allocation12 [shape = 's32[1]{0}', space=sflag, size = 0x4, scoped, tag = 'scoped memory for tpu_custom_call.1']
    #allocation13 [shape = 'u8[512]{0}', space=vmem, size = 0x400, scoped, tag = 'input window, operand 6, single buffered']
    #allocation14 [shape = 'u8[32768]{0}', space=vmem, size = 0x8000, scoped, tag = 'input window, operand 7, single buffered']
    #allocation15 [shape = 's32[1]{0}', space=sflag, size = 0x4, scoped, tag = 'scoped memory for tpu_custom_call.1']
    #allocation16 [shape = 'u8[512]{0}', space=vmem, size = 0x400, scoped, tag = 'input window, operand 8, single buffered']
    #allocation17 [shape = 'u8[32768]{0}', space=vmem, size = 0x8000, scoped, tag = 'input window, operand 9, single buffered']
    #allocation18 [shape = 's32[1]{0}', space=sflag, size = 0x4, scoped, tag = 'scoped memory for tpu_custom_call.1']
    #allocation19 [shape = 'u8[512]{0}', space=vmem, size = 0x400, scoped, tag = 'input window, operand 10, single buffered']
    #allocation20 [shape = 'u8[32768]{0}', space=vmem, size = 0x8000, scoped, tag = 'input window, operand 11, single buffered']
    #allocation21 [shape = 's32[1]{0}', space=sflag, size = 0x4, scoped, tag = 'scoped memory for tpu_custom_call.1']
    #allocation22 [shape = 'u8[512]{0}', space=vmem, size = 0x400, scoped, tag = 'input window, operand 12, single buffered']
    #allocation23 [shape = 'u8[1024]{0}', space=vmem, size = 0x400, scoped, tag = 'output window, operand 0, single buffered']
    #allocation24 [shape = 'u8[1024]{0}', space=vmem, size = 0x400, scoped, tag = 'output window, operand 1, single buffered']
    #allocation25 [shape = 's32[1]{0}', space=sflag, size = 0x4, scoped, tag = 'scoped memory for tpu_custom_call.1']
    %20 = vsyncpa [#allocation3], 0
    %21 = vsyncpa [#allocation6], 0
    %22 = vsyncpa [#allocation9], 0
    %23 = vsyncpa [#allocation12], 0
    %24 = vsyncpa [#allocation15], 0
    %25 = vsyncpa [#allocation18], 0
    %26 = vsyncpa [#allocation21], 0
    %27 = vsyncpa [#allocation4], 0
    %28 = vsyncpa [#allocation25], 0
    // Predicated region
    $region2: #{tpu_custom_call.1} parent=1 // pred_check
      _
    $region3: #{tpu_custom_call.1} parent=1 // pred_check_branch
      %30 = sbr.rel (0) target = $region5
    $region4: #{tpu_custom_call.1} parent=1 // pred_region
      %s32 = ssub.s32 128, 128
      %33 = vsyncadd [#allocation3], %s32
      %s34 = sshll.u32 [#allocation2], 4
      %s35 = int_to_ptr.vmem [resolvable:$true] %s34
      %40 = dma.hbm_to_vmem [thread:$0]  %s0, 128, %s35, [#allocation3], 64, 64, 4
    $region5: #{tpu_custom_call.1} parent=1 // pred_fallthru
      _
    // Predicated region
    $region6: #{tpu_custom_call.1} parent=1 // pred_check
      _
    $region7: #{tpu_custom_call.1} parent=1 // pred_check_branch
      %42 = sbr.rel (0) target = $region9
    $region8: #{tpu_custom_call.1} parent=1 // pred_region
      %s44 = ssub.s32 1024, 1024
      %45 = vsyncadd [#allocation6], %s44
      %s46 = sshll.u32 [#allocation5], 4
      %s47 = int_to_ptr.vmem [resolvable:$true] %s46
      %52 = dma.hbm_to_vmem [thread:$0]  %s1, 1024, %s47, [#allocation6], 64, 64, 4
    $region9: #{tpu_custom_call.1} parent=1 // pred_fallthru
      _
    // Predicated region
    $region10: #{tpu_custom_call.1} parent=1 // pred_check
      _
    $region11: #{tpu_custom_call.1} parent=1 // pred_check_branch
      %54 = sbr.rel (0) target = $region13
    $region12: #{tpu_custom_call.1} parent=1 // pred_region
      %s56 = ssub.s32 16, 16
      %57 = vsyncadd [#allocation6], %s56
      %s59 = sshll.u32 [#allocation7], 4
      %s60 = int_to_ptr.vmem [resolvable:$true] %s59
      %62 = dma.hbm_to_vmem [thread:$0]  %s2, 16, %s60, [#allocation6]
    $region13: #{tpu_custom_call.1} parent=1 // pred_fallthru
      _
    // Predicated region
    $region14: #{tpu_custom_call.1} parent=1 // pred_check
      _
    $region15: #{tpu_custom_call.1} parent=1 // pred_check_branch
      %64 = sbr.rel (0) target = $region17
    $region16: #{tpu_custom_call.1} parent=1 // pred_region
      %s66 = ssub.s32 1024, 1024
      %67 = vsyncadd [#allocation9], %s66
      %s68 = sshll.u32 [#allocation8], 4
      %s69 = int_to_ptr.vmem [resolvable:$true] %s68
      %74 = dma.hbm_to_vmem [thread:$0]  %s3, 1024, %s69, [#allocation9], 64, 64, 4
    $region17: #{tpu_custom_call.1} parent=1 // pred_fallthru
      _
    // Predicated region
    $region18: #{tpu_custom_call.1} parent=1 // pred_check
      _
    $region19: #{tpu_custom_call.1} parent=1 // pred_check_branch
      %76 = sbr.rel (0) target = $region21
    $region20: #{tpu_custom_call.1} parent=1 // pred_region
      %s78 = ssub.s32 16, 16
      %79 = vsyncadd [#allocation9], %s78
      %s81 = sshll.u32 [#allocation10], 4
      %s82 = int_to_ptr.vmem [resolvable:$true] %s81
      %84 = dma.hbm_to_vmem [thread:$0]  %s4, 16, %s82, [#allocation9]
    $region21: #{tpu_custom_call.1} parent=1 // pred_fallthru
      _
    // Predicated region
    $region22: #{tpu_custom_call.1} parent=1 // pred_check
      _
    $region23: #{tpu_custom_call.1} parent=1 // pred_check_branch
      %86 = sbr.rel (0) target = $region25
    $region24: #{tpu_custom_call.1} parent=1 // pred_region
      %s88 = ssub.s32 1024, 1024
      %89 = vsyncadd [#allocation12], %s88
      %s90 = sshll.u32 [#allocation11], 4
      %s91 = int_to_ptr.vmem [resolvable:$true] %s90
      %96 = dma.hbm_to_vmem [thread:$0]  %s5, 1024, %s91, [#allocation12], 64, 64, 4
    $region25: #{tpu_custom_call.1} parent=1 // pred_fallthru
      _
    // Predicated region
    $region26: #{tpu_custom_call.1} parent=1 // pred_check
      _
    $region27: #{tpu_custom_call.1} parent=1 // pred_check_branch
      %98 = sbr.rel (0) target = $region29
    $region28: #{tpu_custom_call.1} parent=1 // pred_region
      %s100 = ssub.s32 16, 16
      %101 = vsyncadd [#allocation12], %s100
      %s103 = sshll.u32 [#allocation13], 4
      %s104 = int_to_ptr.vmem [resolvable:$true] %s103
      %106 = dma.hbm_to_vmem [thread:$0]  %s6, 16, %s104, [#allocation12]
    $region29: #{tpu_custom_call.1} parent=1 // pred_fallthru
      _
    // Predicated region
    $region30: #{tpu_custom_call.1} parent=1 // pred_check
      _
    $region31: #{tpu_custom_call.1} parent=1 // pred_check_branch
      %108 = sbr.rel (0) target = $region33
    $region32: #{tpu_custom_call.1} parent=1 // pred_region
      %s110 = ssub.s32 1024, 1024
      %111 = vsyncadd [#allocation15], %s110
      %s112 = sshll.u32 [#allocation14], 4
      %s113 = int_to_ptr.vmem [resolvable:$true] %s112
      %118 = dma.hbm_to_vmem [thread:$0]  %s7, 1024, %s113, [#allocation15], 64, 64, 4
    $region33: #{tpu_custom_call.1} parent=1 // pred_fallthru
      _
    // Predicated region
    $region34: #{tpu_custom_call.1} parent=1 // pred_check
      _
    $region35: #{tpu_custom_call.1} parent=1 // pred_check_branch
      %120 = sbr.rel (0) target = $region37
    $region36: #{tpu_custom_call.1} parent=1 // pred_region
      %s122 = ssub.s32 16, 16
      %123 = vsyncadd [#allocation15], %s122
      %s125 = sshll.u32 [#allocation16], 4
      %s126 = int_to_ptr.vmem [resolvable:$true] %s125
      %128 = dma.hbm_to_vmem [thread:$0]  %s8, 16, %s126, [#allocation15]
    $region37: #{tpu_custom_call.1} parent=1 // pred_fallthru
      _
    // Predicated region
    $region38: #{tpu_custom_call.1} parent=1 // pred_check
      _
    $region39: #{tpu_custom_call.1} parent=1 // pred_check_branch
      %130 = sbr.rel (0) target = $region41
    $region40: #{tpu_custom_call.1} parent=1 // pred_region
      %s132 = ssub.s32 1024, 1024
      %133 = vsyncadd [#allocation18], %s132
      %s134 = sshll.u32 [#allocation17], 4
      %s135 = int_to_ptr.vmem [resolvable:$true] %s134
      %140 = dma.hbm_to_vmem [thread:$0]  %s9, 1024, %s135, [#allocation18], 64, 64, 4
    $region41: #{tpu_custom_call.1} parent=1 // pred_fallthru
      _
    // Predicated region
    $region42: #{tpu_custom_call.1} parent=1 // pred_check
      _
    $region43: #{tpu_custom_call.1} parent=1 // pred_check_branch
      %142 = sbr.rel (0) target = $region45
    $region44: #{tpu_custom_call.1} parent=1 // pred_region
      %s144 = ssub.s32 16, 16
      %145 = vsyncadd [#allocation18], %s144
      %s147 = sshll.u32 [#allocation19], 4
      %s148 = int_to_ptr.vmem [resolvable:$true] %s147
      %150 = dma.hbm_to_vmem [thread:$0]  %s10, 16, %s148, [#allocation18]
    $region45: #{tpu_custom_call.1} parent=1 // pred_fallthru
      _
    // Predicated region
    $region46: #{tpu_custom_call.1} parent=1 // pred_check
      _
    $region47: #{tpu_custom_call.1} parent=1 // pred_check_branch
      %152 = sbr.rel (0) target = $region49
    $region48: #{tpu_custom_call.1} parent=1 // pred_region
      %s154 = ssub.s32 1024, 1024
      %155 = vsyncadd [#allocation21], %s154
      %s156 = sshll.u32 [#allocation20], 4
      %s157 = int_to_ptr.vmem [resolvable:$true] %s156
      %162 = dma.hbm_to_vmem [thread:$0]  %s11, 1024, %s157, [#allocation21], 64, 64, 4
    $region49: #{tpu_custom_call.1} parent=1 // pred_fallthru
      _
    // Predicated region
    $region50: #{tpu_custom_call.1} parent=1 // pred_check
      _
    $region51: #{tpu_custom_call.1} parent=1 // pred_check_branch
      %164 = sbr.rel (0) target = $region53
    $region52: #{tpu_custom_call.1} parent=1 // pred_region
      %s166 = ssub.s32 16, 16
      %167 = vsyncadd [#allocation21], %s166
      %s169 = sshll.u32 [#allocation22], 4
      %s170 = int_to_ptr.vmem [resolvable:$true] %s169
      %172 = dma.hbm_to_vmem [thread:$0]  %s12, 16, %s170, [#allocation21]
    $region53: #{tpu_custom_call.1} parent=1 // pred_fallthru
      _
    // Predicated region
    $region54: #{tpu_custom_call.1} parent=1 // pred_check
      _
    $region55: #{tpu_custom_call.1} parent=1 // pred_check_branch
      %174 = sbr.rel (0) target = $region57
    $region56: #{tpu_custom_call.1} parent=1 // pred_region
      %175 = dma.done [#allocation3], 128
    $region57: #{tpu_custom_call.1} parent=1 // pred_fallthru
      _
    // Predicated region
    $region58: #{tpu_custom_call.1} parent=1 // pred_check
      _
    $region59: #{tpu_custom_call.1} parent=1 // pred_check_branch
      %177 = sbr.rel (0) target = $region61
    $region60: #{tpu_custom_call.1} parent=1 // pred_region
      %178 = dma.done [#allocation6], 1024
    $region61: #{tpu_custom_call.1} parent=1 // pred_fallthru
      _
    // Predicated region
    $region62: #{tpu_custom_call.1} parent=1 // pred_check
      _
    $region63: #{tpu_custom_call.1} parent=1 // pred_check_branch
      %180 = sbr.rel (0) target = $region65
    $region64: #{tpu_custom_call.1} parent=1 // pred_region
      %181 = dma.done [#allocation6], 16
    $region65: #{tpu_custom_call.1} parent=1 // pred_fallthru
      _
    // Predicated region
    $region66: #{tpu_custom_call.1} parent=1 // pred_check
      _
    $region67: #{tpu_custom_call.1} parent=1 // pred_check_branch
      %183 = sbr.rel (0) target = $region69
    $region68: #{tpu_custom_call.1} parent=1 // pred_region
      %184 = dma.done [#allocation9], 1024
    $region69: #{tpu_custom_call.1} parent=1 // pred_fallthru
      _
    // Predicated region
    $region70: #{tpu_custom_call.1} parent=1 // pred_check
      _
    $region71: #{tpu_custom_call.1} parent=1 // pred_check_branch
      %186 = sbr.rel (0) target = $region73
    $region72: #{tpu_custom_call.1} parent=1 // pred_region
      %187 = dma.done [#allocation9], 16
    $region73: #{tpu_custom_call.1} parent=1 // pred_fallthru
      _
    // Predicated region
    $region74: #{tpu_custom_call.1} parent=1 // pred_check
      _
    $region75: #{tpu_custom_call.1} parent=1 // pred_check_branch
      %189 = sbr.rel (0) target = $region77
    $region76: #{tpu_custom_call.1} parent=1 // pred_region
      %190 = dma.done [#allocation12], 1024
    $region77: #{tpu_custom_call.1} parent=1 // pred_fallthru
      _
    // Predicated region
    $region78: #{tpu_custom_call.1} parent=1 // pred_check
      _
    $region79: #{tpu_custom_call.1} parent=1 // pred_check_branch
      %192 = sbr.rel (0) target = $region81
    $region80: #{tpu_custom_call.1} parent=1 // pred_region
      %193 = dma.done [#allocation12], 16
    $region81: #{tpu_custom_call.1} parent=1 // pred_fallthru
      _
    // Predicated region
    $region82: #{tpu_custom_call.1} parent=1 // pred_check
      _
    $region83: #{tpu_custom_call.1} parent=1 // pred_check_branch
      %195 = sbr.rel (0) target = $region85
    $region84: #{tpu_custom_call.1} parent=1 // pred_region
      %196 = dma.done [#allocation15], 1024
    $region85: #{tpu_custom_call.1} parent=1 // pred_fallthru
      _
    // Predicated region
    $region86: #{tpu_custom_call.1} parent=1 // pred_check
      _
    $region87: #{tpu_custom_call.1} parent=1 // pred_check_branch
      %198 = sbr.rel (0) target = $region89
    $region88: #{tpu_custom_call.1} parent=1 // pred_region
      %199 = dma.done [#allocation15], 16
    $region89: #{tpu_custom_call.1} parent=1 // pred_fallthru
      _
    // Predicated region
    $region90: #{tpu_custom_call.1} parent=1 // pred_check
      _
    $region91: #{tpu_custom_call.1} parent=1 // pred_check_branch
      %201 = sbr.rel (0) target = $region93
    $region92: #{tpu_custom_call.1} parent=1 // pred_region
      %202 = dma.done [#allocation18], 1024
    $region93: #{tpu_custom_call.1} parent=1 // pred_fallthru
      _
    // Predicated region
    $region94: #{tpu_custom_call.1} parent=1 // pred_check
      _
    $region95: #{tpu_custom_call.1} parent=1 // pred_check_branch
      %204 = sbr.rel (0) target = $region97
    $region96: #{tpu_custom_call.1} parent=1 // pred_region
      %205 = dma.done [#allocation18], 16
    $region97: #{tpu_custom_call.1} parent=1 // pred_fallthru
      _
    // Predicated region
    $region98: #{tpu_custom_call.1} parent=1 // pred_check
      _
    $region99: #{tpu_custom_call.1} parent=1 // pred_check_branch
      %207 = sbr.rel (0) target = $region101
    $region100: #{tpu_custom_call.1} parent=1 // pred_region
      %208 = dma.done [#allocation21], 1024
    $region101: #{tpu_custom_call.1} parent=1 // pred_fallthru
      _
    // Predicated region
    $region102: #{tpu_custom_call.1} parent=1 // pred_check
      _
    $region103: #{tpu_custom_call.1} parent=1 // pred_check_branch
      %210 = sbr.rel (0) target = $region105
    $region104: #{tpu_custom_call.1} parent=1 // pred_region
      %211 = dma.done [#allocation21], 16
    $region105: #{tpu_custom_call.1} parent=1 // pred_fallthru
      _
    %v213 = vld [vmem:[#allocation2] sm:$0xf]
    %v214 = vld [vmem:[#allocation2 + $0x4] sm:$0xf]
    %v215 = vld [vmem:[#allocation5] sm:$0xf]
    %v216 = vld [vmem:[#allocation5 + $0x4] sm:$0xf]
    %v217 = vld [vmem:[#allocation5 + $0x8] sm:$0xf]
    %v218 = vld [vmem:[#allocation5 + $0xc] sm:$0xf]
    %v219 = vld [vmem:[#allocation5 + $0x10] sm:$0xf]
    %v220 = vld [vmem:[#allocation5 + $0x14] sm:$0xf]
    %v221 = vld [vmem:[#allocation5 + $0x18] sm:$0xf]
    %v222 = vld [vmem:[#allocation5 + $0x1c] sm:$0xf]
    %v223 = vld [vmem:[#allocation5 + $0x20] sm:$0xf]
    %v224 = vld [vmem:[#allocation5 + $0x24] sm:$0xf]
    %v225 = vld [vmem:[#allocation5 + $0x28] sm:$0xf]
    %v226 = vld [vmem:[#allocation5 + $0x2c] sm:$0xf]
    %v227 = vld [vmem:[#allocation5 + $0x30] sm:$0xf]
    %v228 = vld [vmem:[#allocation5 + $0x34] sm:$0xf]
    %v229 = vld [vmem:[#allocation5 + $0x38] sm:$0xf]
    %v230 = vld [vmem:[#allocation5 + $0x3c] sm:$0xf]
    %v231 = vld [vmem:[#allocation7] sm:$0x1]
    %v233 = vlaneseq
    %v234 = vshrl.u32 %v233, 7
    %v235 = vsub.s32 0, %v234
    %v236 = vrot.slane %v231, %v235
    %v240 = vunpack.c.l.b16 %v213
    %v241 = vunpack.c.l.b16 %v214
    %v242 = vpack.c.b16 %v241, %v240
    %v260 = vunpack.c.l.b16 %v215
    %v261 = vunpack.c.l.b16 %v216
    %v262 = vunpack.c.l.b16 %v217
    %v263 = vunpack.c.l.b16 %v218
    %v264 = vunpack.c.l.b16 %v219
    %v265 = vunpack.c.l.b16 %v220
    %v266 = vunpack.c.l.b16 %v221
    %v267 = vunpack.c.l.b16 %v222
    %v268 = vunpack.c.l.b16 %v223
    %v269 = vunpack.c.l.b16 %v224
    %v270 = vunpack.c.l.b16 %v225
    %v271 = vunpack.c.l.b16 %v226
    %v272 = vunpack.c.l.b16 %v227
    %v273 = vunpack.c.l.b16 %v228
    %v274 = vunpack.c.l.b16 %v229
    %v275 = vunpack.c.l.b16 %v230
    %v276 = vpack.c.b16 %v261, %v260
    %v277 = vpack.c.b16 %v263, %v262
    %v278 = vpack.c.b16 %v265, %v264
    %v279 = vpack.c.b16 %v267, %v266
    %v280 = vpack.c.b16 %v269, %v268
    %v281 = vpack.c.b16 %v271, %v270
    %v282 = vpack.c.b16 %v273, %v272
    %v283 = vpack.c.b16 %v275, %v274
    %292 = vmatprep.subr.bf16.mxu0 0
    %293 = vmatpush1.bf16.msra.mxu0 %v276
    %294 = vmatprep.subr.bf16.mxu0 0
    %295 = vmatpush1.bf16.msra.mxu0 %v277
    %296 = vmatprep.subr.bf16.mxu0 0
    %297 = vmatpush1.bf16.msra.mxu0 %v278
    %298 = vmatprep.subr.bf16.mxu0 0
    %299 = vmatpush1.bf16.msra.mxu0 %v279
    %300 = vmatprep.subr.bf16.mxu0 0
    %301 = vmatpush1.bf16.msra.mxu0 %v280
    %302 = vmatprep.subr.bf16.mxu0 0
    %303 = vmatpush1.bf16.msra.mxu0 %v281
    %304 = vmatprep.subr.bf16.mxu0 0
    %305 = vmatpush1.bf16.msra.mxu0 %v282
    %306 = vmatprep.subr.bf16.mxu0 0
    %307 = vmatpush1.bf16.msra.mxu0 %v283
    %308 = vmatprep.subr.bf16.mxu0 0
    %309 = vmatpush1.bf16.msra.mxu0 0
    %310 = vmatprep.subr.bf16.mxu0 0
    %311 = vmatpush1.bf16.msra.mxu0 0
    %312 = vmatprep.subr.bf16.mxu0 0
    %313 = vmatpush1.bf16.msra.mxu0 0
    %314 = vmatprep.subr.bf16.mxu0 0
    %315 = vmatpush1.bf16.msra.mxu0 0
    %316 = vmatprep.subr.bf16.mxu0 0
    %317 = vmatpush1.bf16.msra.mxu0 0
    %318 = vmatprep.subr.bf16.mxu0 0
    %319 = vmatpush1.bf16.msra.mxu0 0
    %320 = vmatprep.subr.bf16.mxu0 0
    %321 = vmatpush1.bf16.msra.mxu0 0
    %322 = vmatprep.subr.bf16.mxu0 0
    %323 = vmatpush1.bf16.msra.mxu0 0
    %324 = vmatprep.mubr.bf16.mxu0 0
    %325 = vmatmul.mubr.bf16.gmra.mrb[0].mxu0 %v242
    %v326 = vpop.f32.mrb[0].mxu0
    %v327 = vadd.f32 %v236, %v326
    %v328 = vpop.f32.mrb[0].mxu0
    %v329 = vpop.f32.mrb[0].mxu0
    %v330 = vadd.f32 %v236, %v329
    %v331 = vpop.f32.mrb[0].mxu0
    %332 = vdwg.mxu0
    %v333 = vmul.f32 %v327, 0.01
    %v334 = vmul.f32 %v330, 0.01
    %v335 = vmax.f32 %v327, %v333
    %v336 = vmax.f32 %v330, %v334
    %v337 = vpack.c.bf16 %v336, %v335
    %v338 = vld [vmem:[#allocation8] sm:$0xf]
    %v339 = vld [vmem:[#allocation8 + $0x4] sm:$0xf]
    %v340 = vld [vmem:[#allocation8 + $0x8] sm:$0xf]
    %v341 = vld [vmem:[#allocation8 + $0xc] sm:$0xf]
    %v342 = vld [vmem:[#allocation8 + $0x10] sm:$0xf]
    %v343 = vld [vmem:[#allocation8 + $0x14] sm:$0xf]
    %v344 = vld [vmem:[#allocation8 + $0x18] sm:$0xf]
    %v345 = vld [vmem:[#allocation8 + $0x1c] sm:$0xf]
    %v346 = vld [vmem:[#allocation8 + $0x20] sm:$0xf]
    %v347 = vld [vmem:[#allocation8 + $0x24] sm:$0xf]
    %v348 = vld [vmem:[#allocation8 + $0x28] sm:$0xf]
    %v349 = vld [vmem:[#allocation8 + $0x2c] sm:$0xf]
    %v350 = vld [vmem:[#allocation8 + $0x30] sm:$0xf]
    %v351 = vld [vmem:[#allocation8 + $0x34] sm:$0xf]
    %v352 = vld [vmem:[#allocation8 + $0x38] sm:$0xf]
    %v353 = vld [vmem:[#allocation8 + $0x3c] sm:$0xf]
    %v354 = vld [vmem:[#allocation10] sm:$0x1]
    %v356 = vlaneseq
    %v357 = vshrl.u32 %v356, 7
    %v358 = vsub.s32 0, %v357
    %v359 = vrot.slane %v354, %v358
    %v377 = vunpack.c.l.b16 %v338
    %v378 = vunpack.c.l.b16 %v339
    %v379 = vunpack.c.l.b16 %v340
    %v380 = vunpack.c.l.b16 %v341
    %v381 = vunpack.c.l.b16 %v342
    %v382 = vunpack.c.l.b16 %v343
    %v383 = vunpack.c.l.b16 %v344
    %v384 = vunpack.c.l.b16 %v345
    %v385 = vunpack.c.l.b16 %v346
    %v386 = vunpack.c.l.b16 %v347
    %v387 = vunpack.c.l.b16 %v348
    %v388 = vunpack.c.l.b16 %v349
    %v389 = vunpack.c.l.b16 %v350
    %v390 = vunpack.c.l.b16 %v351
    %v391 = vunpack.c.l.b16 %v352
    %v392 = vunpack.c.l.b16 %v353
    %v393 = vpack.c.b16 %v378, %v377
    %v394 = vpack.c.b16 %v380, %v379
    %v395 = vpack.c.b16 %v382, %v381
    %v396 = vpack.c.b16 %v384, %v383
    %v397 = vpack.c.b16 %v386, %v385
    %v398 = vpack.c.b16 %v388, %v387
    %v399 = vpack.c.b16 %v390, %v389
    %v400 = vpack.c.b16 %v392, %v391
    %409 = vmatprep.subr.bf16.mxu0 0
    %410 = vmatpush1.bf16.msra.mxu0 %v393
    %411 = vmatprep.subr.bf16.mxu0 0
    %412 = vmatpush1.bf16.msra.mxu0 %v394
    %413 = vmatprep.subr.bf16.mxu0 0
    %414 = vmatpush1.bf16.msra.mxu0 %v395
    %415 = vmatprep.subr.bf16.mxu0 0
    %416 = vmatpush1.bf16.msra.mxu0 %v396
    %417 = vmatprep.subr.bf16.mxu0 0
    %418 = vmatpush1.bf16.msra.mxu0 %v397
    %419 = vmatprep.subr.bf16.mxu0 0
    %420 = vmatpush1.bf16.msra.mxu0 %v398
    %421 = vmatprep.subr.bf16.mxu0 0
    %422 = vmatpush1.bf16.msra.mxu0 %v399
    %423 = vmatprep.subr.bf16.mxu0 0
    %424 = vmatpush1.bf16.msra.mxu0 %v400
    %425 = vmatprep.subr.bf16.mxu0 0
    %426 = vmatpush1.bf16.msra.mxu0 0
    %427 = vmatprep.subr.bf16.mxu0 0
    %428 = vmatpush1.bf16.msra.mxu0 0
    %429 = vmatprep.subr.bf16.mxu0 0
    %430 = vmatpush1.bf16.msra.mxu0 0
    %431 = vmatprep.subr.bf16.mxu0 0
    %432 = vmatpush1.bf16.msra.mxu0 0
    %433 = vmatprep.subr.bf16.mxu0 0
    %434 = vmatpush1.bf16.msra.mxu0 0
    %435 = vmatprep.subr.bf16.mxu0 0
    %436 = vmatpush1.bf16.msra.mxu0 0
    %437 = vmatprep.subr.bf16.mxu0 0
    %438 = vmatpush1.bf16.msra.mxu0 0
    %439 = vmatprep.subr.bf16.mxu0 0
    %440 = vmatpush1.bf16.msra.mxu0 0
    %441 = vmatprep.mubr.bf16.mxu0 0
    %442 = vmatmul.mubr.bf16.gmra.mrb[0].mxu0 %v337
    %v443 = vpop.f32.mrb[0].mxu0
    %v444 = vadd.f32 %v359, %v443
    %v445 = vpop.f32.mrb[0].mxu0
    %v446 = vpop.f32.mrb[0].mxu0
    %v447 = vadd.f32 %v359, %v446
    %v448 = vpop.f32.mrb[0].mxu0
    %449 = vdwg.mxu0
    %v450 = vmul.f32 %v444, 0.01
    %v451 = vmul.f32 %v447, 0.01
    %v452 = vmax.f32 %v444, %v450
    %v453 = vmax.f32 %v447, %v451
    %v454 = vrot.slane %v452, 4
    %v455 = vadd.f32 %v452, %v454
    %v456 = vrot.slane %v455, 2
    %v457 = vadd.f32 %v455, %v456
    %v458 = vrot.slane %v457, 1
    %v459 = vadd.f32 %v457, %v458
    %v460 = vrot.slane %v453, 4
    %v461 = vadd.f32 %v453, %v460
    %v462 = vrot.slane %v461, 2
    %v463 = vadd.f32 %v461, %v462
    %v464 = vrot.slane %v463, 1
    %v465 = vadd.f32 %v463, %v464
    %v466 = vpack.c.bf16 %v459, %v459
    %v467 = vpack.c.bf16 %v465, %v465
    %v468 = vld [vmem:[#allocation11] sm:$0xf]
    %v469 = vld [vmem:[#allocation11 + $0x4] sm:$0xf]
    %v470 = vld [vmem:[#allocation11 + $0x8] sm:$0xf]
    %v471 = vld [vmem:[#allocation11 + $0xc] sm:$0xf]
    %v472 = vld [vmem:[#allocation11 + $0x10] sm:$0xf]
    %v473 = vld [vmem:[#allocation11 + $0x14] sm:$0xf]
    %v474 = vld [vmem:[#allocation11 + $0x18] sm:$0xf]
    %v475 = vld [vmem:[#allocation11 + $0x1c] sm:$0xf]
    %v476 = vld [vmem:[#allocation11 + $0x20] sm:$0xf]
    %v477 = vld [vmem:[#allocation11 + $0x24] sm:$0xf]
    %v478 = vld [vmem:[#allocation11 + $0x28] sm:$0xf]
    %v479 = vld [vmem:[#allocation11 + $0x2c] sm:$0xf]
    %v480 = vld [vmem:[#allocation11 + $0x30] sm:$0xf]
    %v481 = vld [vmem:[#allocation11 + $0x34] sm:$0xf]
    %v482 = vld [vmem:[#allocation11 + $0x38] sm:$0xf]
    %v483 = vld [vmem:[#allocation11 + $0x3c] sm:$0xf]
    %v484 = vld [vmem:[#allocation13] sm:$0x1]
    %v486 = vlaneseq
    %v487 = vshrl.u32 %v486, 7
    %v488 = vsub.s32 0, %v487
    %v489 = vrot.slane %v484, %v488
    %v493 = vunpack.c.l.b16 %v466
    %v494 = vunpack.c.l.b16 %v467
    %vm495 = vcmask 1041409
    %v496 = vsel %vm495, %v494, %v493
    %v497 = vpack.c.b16 %v496, %v496
    %v515 = vunpack.c.l.b16 %v468
    %v516 = vunpack.c.l.b16 %v469
    %v517 = vunpack.c.l.b16 %v470
    %v518 = vunpack.c.l.b16 %v471
    %v519 = vunpack.c.l.b16 %v472
    %v520 = vunpack.c.l.b16 %v473
    %v521 = vunpack.c.l.b16 %v474
    %v522 = vunpack.c.l.b16 %v475
    %v523 = vunpack.c.l.b16 %v476
    %v524 = vunpack.c.l.b16 %v477
    %v525 = vunpack.c.l.b16 %v478
    %v526 = vunpack.c.l.b16 %v479
    %v527 = vunpack.c.l.b16 %v480
    %v528 = vunpack.c.l.b16 %v481
    %v529 = vunpack.c.l.b16 %v482
    %v530 = vunpack.c.l.b16 %v483
    %v531 = vpack.c.b16 %v516, %v515
    %v532 = vpack.c.b16 %v518, %v517
    %v533 = vpack.c.b16 %v520, %v519
    %v534 = vpack.c.b16 %v522, %v521
    %v535 = vpack.c.b16 %v524, %v523
    %v536 = vpack.c.b16 %v526, %v525
    %v537 = vpack.c.b16 %v528, %v527
    %v538 = vpack.c.b16 %v530, %v529
    %547 = vmatprep.subr.bf16.mxu0 0
    %548 = vmatpush1.bf16.msra.mxu0 %v531
    %549 = vmatprep.subr.bf16.mxu0 0
    %550 = vmatpush1.bf16.msra.mxu0 %v532
    %551 = vmatprep.subr.bf16.mxu0 0
    %552 = vmatpush1.bf16.msra.mxu0 %v533
    %553 = vmatprep.subr.bf16.mxu0 0
    %554 = vmatpush1.bf16.msra.mxu0 %v534
    %555 = vmatprep.subr.bf16.mxu0 0
    %556 = vmatpush1.bf16.msra.mxu0 %v535
    %557 = vmatprep.subr.bf16.mxu0 0
    %558 = vmatpush1.bf16.msra.mxu0 %v536
    %559 = vmatprep.subr.bf16.mxu0 0
    %560 = vmatpush1.bf16.msra.mxu0 %v537
    %561 = vmatprep.subr.bf16.mxu0 0
    %562 = vmatpush1.bf16.msra.mxu0 %v538
    %563 = vmatprep.subr.bf16.mxu0 0
    %564 = vmatpush1.bf16.msra.mxu0 0
    %565 = vmatprep.subr.bf16.mxu0 0
    %566 = vmatpush1.bf16.msra.mxu0 0
    %567 = vmatprep.subr.bf16.mxu0 0
    %568 = vmatpush1.bf16.msra.mxu0 0
    %569 = vmatprep.subr.bf16.mxu0 0
    %570 = vmatpush1.bf16.msra.mxu0 0
    %571 = vmatprep.subr.bf16.mxu0 0
    %572 = vmatpush1.bf16.msra.mxu0 0
    %573 = vmatprep.subr.bf16.mxu0 0
    %574 = vmatpush1.bf16.msra.mxu0 0
    %575 = vmatprep.subr.bf16.mxu0 0
    %576 = vmatpush1.bf16.msra.mxu0 0
    %577 = vmatprep.subr.bf16.mxu0 0
    %578 = vmatpush1.bf16.msra.mxu0 0
    %579 = vmatprep.mubr.bf16.mxu0 0
    %580 = vmatmul.mubr.bf16.gmra.mrb[0].mxu0 %v497
    %v581 = vpop.f32.mrb[0].mxu0
    %v582 = vadd.f32 %v489, %v581
    %v583 = vpop.f32.mrb[0].mxu0
    %v584 = vpop.f32.mrb[0].mxu0
    %v585 = vpop.f32.mrb[0].mxu0
    %586 = vdwg.mxu0
    %v587 = vmul.f32 %v582, 0.01
    %v588 = vmax.f32 %v582, %v587
    %589 = vst [vmem:[#allocation24] sm:$0x3] %v588
    %v590 = vpack.c.bf16 %v588, %v588
    %v591 = vld [vmem:[#allocation14] sm:$0xf]
    %v592 = vld [vmem:[#allocation14 + $0x4] sm:$0xf]
    %v593 = vld [vmem:[#allocation14 + $0x8] sm:$0xf]
    %v594 = vld [vmem:[#allocation14 + $0xc] sm:$0xf]
    %v595 = vld [vmem:[#allocation14 + $0x10] sm:$0xf]
    %v596 = vld [vmem:[#allocation14 + $0x14] sm:$0xf]
    %v597 = vld [vmem:[#allocation14 + $0x18] sm:$0xf]
    %v598 = vld [vmem:[#allocation14 + $0x1c] sm:$0xf]
    %v599 = vld [vmem:[#allocation14 + $0x20] sm:$0xf]
    %v600 = vld [vmem:[#allocation14 + $0x24] sm:$0xf]
    %v601 = vld [vmem:[#allocation14 + $0x28] sm:$0xf]
    %v602 = vld [vmem:[#allocation14 + $0x2c] sm:$0xf]
    %v603 = vld [vmem:[#allocation14 + $0x30] sm:$0xf]
    %v604 = vld [vmem:[#allocation14 + $0x34] sm:$0xf]
    %v605 = vld [vmem:[#allocation14 + $0x38] sm:$0xf]
    %v606 = vld [vmem:[#allocation14 + $0x3c] sm:$0xf]
    %v607 = vld [vmem:[#allocation16] sm:$0x1]
    %v609 = vlaneseq
    %v610 = vshrl.u32 %v609, 7
    %v611 = vsub.s32 0, %v610
    %v612 = vrot.slane %v607, %v611
    %v630 = vunpack.c.l.b16 %v591
    %v631 = vunpack.c.l.b16 %v592
    %v632 = vunpack.c.l.b16 %v593
    %v633 = vunpack.c.l.b16 %v594
    %v634 = vunpack.c.l.b16 %v595
    %v635 = vunpack.c.l.b16 %v596
    %v636 = vunpack.c.l.b16 %v597
    %v637 = vunpack.c.l.b16 %v598
    %v638 = vunpack.c.l.b16 %v599
    %v639 = vunpack.c.l.b16 %v600
    %v640 = vunpack.c.l.b16 %v601
    %v641 = vunpack.c.l.b16 %v602
    %v642 = vunpack.c.l.b16 %v603
    %v643 = vunpack.c.l.b16 %v604
    %v644 = vunpack.c.l.b16 %v605
    %v645 = vunpack.c.l.b16 %v606
    %v646 = vpack.c.b16 %v631, %v630
    %v647 = vpack.c.b16 %v633, %v632
    %v648 = vpack.c.b16 %v635, %v634
    %v649 = vpack.c.b16 %v637, %v636
    %v650 = vpack.c.b16 %v639, %v638
    %v651 = vpack.c.b16 %v641, %v640
    %v652 = vpack.c.b16 %v643, %v642
    %v653 = vpack.c.b16 %v645, %v644
    %662 = vmatprep.subr.bf16.mxu0 0
    %663 = vmatpush1.bf16.msra.mxu0 %v646
    %664 = vmatprep.subr.bf16.mxu0 0
    %665 = vmatpush1.bf16.msra.mxu0 %v647
    %666 = vmatprep.subr.bf16.mxu0 0
    %667 = vmatpush1.bf16.msra.mxu0 %v648
    %668 = vmatprep.subr.bf16.mxu0 0
    %669 = vmatpush1.bf16.msra.mxu0 %v649
    %670 = vmatprep.subr.bf16.mxu0 0
    %671 = vmatpush1.bf16.msra.mxu0 %v650
    %672 = vmatprep.subr.bf16.mxu0 0
    %673 = vmatpush1.bf16.msra.mxu0 %v651
    %674 = vmatprep.subr.bf16.mxu0 0
    %675 = vmatpush1.bf16.msra.mxu0 %v652
    %676 = vmatprep.subr.bf16.mxu0 0
    %677 = vmatpush1.bf16.msra.mxu0 %v653
    %678 = vmatprep.subr.bf16.mxu0 0
    %679 = vmatpush1.bf16.msra.mxu0 0
    %680 = vmatprep.subr.bf16.mxu0 0
    %681 = vmatpush1.bf16.msra.mxu0 0
    %682 = vmatprep.subr.bf16.mxu0 0
    %683 = vmatpush1.bf16.msra.mxu0 0
    %684 = vmatprep.subr.bf16.mxu0 0
    %685 = vmatpush1.bf16.msra.mxu0 0
    %686 = vmatprep.subr.bf16.mxu0 0
    %687 = vmatpush1.bf16.msra.mxu0 0
    %688 = vmatprep.subr.bf16.mxu0 0
    %689 = vmatpush1.bf16.msra.mxu0 0
    %690 = vmatprep.subr.bf16.mxu0 0
    %691 = vmatpush1.bf16.msra.mxu0 0
    %692 = vmatprep.subr.bf16.mxu0 0
    %693 = vmatpush1.bf16.msra.mxu0 0
    %694 = vmatprep.mubr.bf16.mxu0 0
    %695 = vmatmul.mubr.bf16.gmra.mrb[0].mxu0 %v590
    %v696 = vpop.f32.mrb[0].mxu0
    %v697 = vadd.f32 %v612, %v696
    %v698 = vpop.f32.mrb[0].mxu0
    %v699 = vpop.f32.mrb[0].mxu0
    %v700 = vpop.f32.mrb[0].mxu0
    %701 = vdwg.mxu0
    %v702 = vmul.f32 %v697, 0.01
    %v703 = vmax.f32 %v697, %v702
    %v704 = vpack.c.bf16 %v703, %v703
    %v705 = vld [vmem:[#allocation17] sm:$0xf]
    %v706 = vld [vmem:[#allocation17 + $0x4] sm:$0xf]
    %v707 = vld [vmem:[#allocation17 + $0x8] sm:$0xf]
    %v708 = vld [vmem:[#allocation17 + $0xc] sm:$0xf]
    %v709 = vld [vmem:[#allocation17 + $0x10] sm:$0xf]
    %v710 = vld [vmem:[#allocation17 + $0x14] sm:$0xf]
    %v711 = vld [vmem:[#allocation17 + $0x18] sm:$0xf]
    %v712 = vld [vmem:[#allocation17 + $0x1c] sm:$0xf]
    %v713 = vld [vmem:[#allocation17 + $0x20] sm:$0xf]
    %v714 = vld [vmem:[#allocation17 + $0x24] sm:$0xf]
    %v715 = vld [vmem:[#allocation17 + $0x28] sm:$0xf]
    %v716 = vld [vmem:[#allocation17 + $0x2c] sm:$0xf]
    %v717 = vld [vmem:[#allocation17 + $0x30] sm:$0xf]
    %v718 = vld [vmem:[#allocation17 + $0x34] sm:$0xf]
    %v719 = vld [vmem:[#allocation17 + $0x38] sm:$0xf]
    %v720 = vld [vmem:[#allocation17 + $0x3c] sm:$0xf]
    %v721 = vld [vmem:[#allocation19] sm:$0x1]
    %v723 = vlaneseq
    %v724 = vshrl.u32 %v723, 7
    %v725 = vsub.s32 0, %v724
    %v726 = vrot.slane %v721, %v725
    %v744 = vunpack.c.l.b16 %v705
    %v745 = vunpack.c.l.b16 %v706
    %v746 = vunpack.c.l.b16 %v707
    %v747 = vunpack.c.l.b16 %v708
    %v748 = vunpack.c.l.b16 %v709
    %v749 = vunpack.c.l.b16 %v710
    %v750 = vunpack.c.l.b16 %v711
    %v751 = vunpack.c.l.b16 %v712
    %v752 = vunpack.c.l.b16 %v713
    %v753 = vunpack.c.l.b16 %v714
    %v754 = vunpack.c.l.b16 %v715
    %v755 = vunpack.c.l.b16 %v716
    %v756 = vunpack.c.l.b16 %v717
    %v757 = vunpack.c.l.b16 %v718
    %v758 = vunpack.c.l.b16 %v719
    %v759 = vunpack.c.l.b16 %v720
    %v760 = vpack.c.b16 %v745, %v744
    %v761 = vpack.c.b16 %v747, %v746
    %v762 = vpack.c.b16 %v749, %v748
    %v763 = vpack.c.b16 %v751, %v750
    %v764 = vpack.c.b16 %v753, %v752
    %v765 = vpack.c.b16 %v755, %v754
    %v766 = vpack.c.b16 %v757, %v756
    %v767 = vpack.c.b16 %v759, %v758
    %776 = vmatprep.subr.bf16.mxu0 0
    %777 = vmatpush1.bf16.msra.mxu0 %v760
    %778 = vmatprep.subr.bf16.mxu0 0
    %779 = vmatpush1.bf16.msra.mxu0 %v761
    %780 = vmatprep.subr.bf16.mxu0 0
    %781 = vmatpush1.bf16.msra.mxu0 %v762
    %782 = vmatprep.subr.bf16.mxu0 0
    %783 = vmatpush1.bf16.msra.mxu0 %v763
    %784 = vmatprep.subr.bf16.mxu0 0
    %785 = vmatpush1.bf16.msra.mxu0 %v764
    %786 = vmatprep.subr.bf16.mxu0 0
    %787 = vmatpush1.bf16.msra.mxu0 %v765
    %788 = vmatprep.subr.bf16.mxu0 0
    %789 = vmatpush1.bf16.msra.mxu0 %v766
    %790 = vmatprep.subr.bf16.mxu0 0
    %791 = vmatpush1.bf16.msra.mxu0 %v767
    %792 = vmatprep.subr.bf16.mxu0 0
    %793 = vmatpush1.bf16.msra.mxu0 0
    %794 = vmatprep.subr.bf16.mxu0 0
    %795 = vmatpush1.bf16.msra.mxu0 0
    %796 = vmatprep.subr.bf16.mxu0 0
    %797 = vmatpush1.bf16.msra.mxu0 0
    %798 = vmatprep.subr.bf16.mxu0 0
    %799 = vmatpush1.bf16.msra.mxu0 0
    %800 = vmatprep.subr.bf16.mxu0 0
    %801 = vmatpush1.bf16.msra.mxu0 0
    %802 = vmatprep.subr.bf16.mxu0 0
    %803 = vmatpush1.bf16.msra.mxu0 0
    %804 = vmatprep.subr.bf16.mxu0 0
    %805 = vmatpush1.bf16.msra.mxu0 0
    %806 = vmatprep.subr.bf16.mxu0 0
    %807 = vmatpush1.bf16.msra.mxu0 0
    %808 = vmatprep.mubr.bf16.mxu0 0
    %809 = vmatmul.mubr.bf16.gmra.mrb[0].mxu0 %v704
    %v810 = vpop.f32.mrb[0].mxu0
    %v811 = vadd.f32 %v726, %v810
    %v812 = vpop.f32.mrb[0].mxu0
    %v813 = vpop.f32.mrb[0].mxu0
    %v814 = vpop.f32.mrb[0].mxu0
    %815 = vdwg.mxu0
    %v816 = vmul.f32 %v811, 0.01
    %v817 = vmax.f32 %v811, %v816
    %v818 = vpack.c.bf16 %v817, %v817
    %v819 = vld [vmem:[#allocation20] sm:$0xf]
    %v820 = vld [vmem:[#allocation20 + $0x4] sm:$0xf]
    %v821 = vld [vmem:[#allocation20 + $0x8] sm:$0xf]
    %v822 = vld [vmem:[#allocation20 + $0xc] sm:$0xf]
    %v823 = vld [vmem:[#allocation20 + $0x10] sm:$0xf]
    %v824 = vld [vmem:[#allocation20 + $0x14] sm:$0xf]
    %v825 = vld [vmem:[#allocation20 + $0x18] sm:$0xf]
    %v826 = vld [vmem:[#allocation20 + $0x1c] sm:$0xf]
    %v827 = vld [vmem:[#allocation20 + $0x20] sm:$0xf]
    %v828 = vld [vmem:[#allocation20 + $0x24] sm:$0xf]
    %v829 = vld [vmem:[#allocation20 + $0x28] sm:$0xf]
    %v830 = vld [vmem:[#allocation20 + $0x2c] sm:$0xf]
    %v831 = vld [vmem:[#allocation20 + $0x30] sm:$0xf]
    %v832 = vld [vmem:[#allocation20 + $0x34] sm:$0xf]
    %v833 = vld [vmem:[#allocation20 + $0x38] sm:$0xf]
    %v834 = vld [vmem:[#allocation20 + $0x3c] sm:$0xf]
    %v835 = vld [vmem:[#allocation22] sm:$0x1]
    %v837 = vlaneseq
    %v838 = vshrl.u32 %v837, 7
    %v839 = vsub.s32 0, %v838
    %v840 = vrot.slane %v835, %v839
    %v858 = vunpack.c.l.b16 %v819
    %v859 = vunpack.c.l.b16 %v820
    %v860 = vunpack.c.l.b16 %v821
    %v861 = vunpack.c.l.b16 %v822
    %v862 = vunpack.c.l.b16 %v823
    %v863 = vunpack.c.l.b16 %v824
    %v864 = vunpack.c.l.b16 %v825
    %v865 = vunpack.c.l.b16 %v826
    %v866 = vunpack.c.l.b16 %v827
    %v867 = vunpack.c.l.b16 %v828
    %v868 = vunpack.c.l.b16 %v829
    %v869 = vunpack.c.l.b16 %v830
    %v870 = vunpack.c.l.b16 %v831
    %v871 = vunpack.c.l.b16 %v832
    %v872 = vunpack.c.l.b16 %v833
    %v873 = vunpack.c.l.b16 %v834
    %v874 = vpack.c.b16 %v859, %v858
    %v875 = vpack.c.b16 %v861, %v860
    %v876 = vpack.c.b16 %v863, %v862
    %v877 = vpack.c.b16 %v865, %v864
    %v878 = vpack.c.b16 %v867, %v866
    %v879 = vpack.c.b16 %v869, %v868
    %v880 = vpack.c.b16 %v871, %v870
    %v881 = vpack.c.b16 %v873, %v872
    %890 = vmatprep.subr.bf16.mxu0 0
    %891 = vmatpush1.bf16.msra.mxu0 %v874
    %892 = vmatprep.subr.bf16.mxu0 0
    %893 = vmatpush1.bf16.msra.mxu0 %v875
    %894 = vmatprep.subr.bf16.mxu0 0
    %895 = vmatpush1.bf16.msra.mxu0 %v876
    %896 = vmatprep.subr.bf16.mxu0 0
    %897 = vmatpush1.bf16.msra.mxu0 %v877
    %898 = vmatprep.subr.bf16.mxu0 0
    %899 = vmatpush1.bf16.msra.mxu0 %v878
    %900 = vmatprep.subr.bf16.mxu0 0
    %901 = vmatpush1.bf16.msra.mxu0 %v879
    %902 = vmatprep.subr.bf16.mxu0 0
    %903 = vmatpush1.bf16.msra.mxu0 %v880
    %904 = vmatprep.subr.bf16.mxu0 0
    %905 = vmatpush1.bf16.msra.mxu0 %v881
    %906 = vmatprep.subr.bf16.mxu0 0
    %907 = vmatpush1.bf16.msra.mxu0 0
    %908 = vmatprep.subr.bf16.mxu0 0
    %909 = vmatpush1.bf16.msra.mxu0 0
    %910 = vmatprep.subr.bf16.mxu0 0
    %911 = vmatpush1.bf16.msra.mxu0 0
    %912 = vmatprep.subr.bf16.mxu0 0
    %913 = vmatpush1.bf16.msra.mxu0 0
    %914 = vmatprep.subr.bf16.mxu0 0
    %915 = vmatpush1.bf16.msra.mxu0 0
    %916 = vmatprep.subr.bf16.mxu0 0
    %917 = vmatpush1.bf16.msra.mxu0 0
    %918 = vmatprep.subr.bf16.mxu0 0
    %919 = vmatpush1.bf16.msra.mxu0 0
    %920 = vmatprep.subr.bf16.mxu0 0
    %921 = vmatpush1.bf16.msra.mxu0 0
    %922 = vmatprep.mubr.bf16.mxu0 0
    %923 = vmatmul.mubr.bf16.gmra.mrb[0].mxu0 %v818
    %v924 = vpop.f32.mrb[0].mxu0
    %v925 = vadd.f32 %v840, %v924
    %v926 = vpop.f32.mrb[0].mxu0
    %v927 = vpop.f32.mrb[0].mxu0
    %v928 = vpop.f32.mrb[0].mxu0
    %929 = vdwg.mxu0
    %v930 = vmul.f32 %v925, 0.01
    %v931 = vmax.f32 %v925, %v930
    %932 = vst [vmem:[#allocation23] sm:$0x3] %v931
    // Predicated region
    $region106: #{tpu_custom_call.1} parent=1 // pred_check
      _
    $region107: #{tpu_custom_call.1} parent=1 // pred_check_branch
      %934 = sbr.rel (0) target = $region109
    $region108: #{tpu_custom_call.1} parent=1 // pred_region
      %s936 = ssub.s32 32, 32
      %937 = vsyncadd [#allocation4], %s936
      %s939 = sshll.u32 [#allocation23], 4
      %s940 = int_to_ptr.vmem [resolvable:$true] %s939
      %942 = dma.vmem_to_hbm [thread:$0]  %s940, 32, %s13, [#allocation4]
    $region109: #{tpu_custom_call.1} parent=1 // pred_fallthru
      _
    // Predicated region
    $region110: #{tpu_custom_call.1} parent=1 // pred_check
      _
    $region111: #{tpu_custom_call.1} parent=1 // pred_check_branch
      %944 = sbr.rel (0) target = $region113
    $region112: #{tpu_custom_call.1} parent=1 // pred_region
      %s946 = ssub.s32 32, 32
      %947 = vsyncadd [#allocation25], %s946
      %s949 = sshll.u32 [#allocation24], 4
      %s950 = int_to_ptr.vmem [resolvable:$true] %s949
      %952 = dma.vmem_to_hbm [thread:$0]  %s950, 32, %s14, [#allocation25]
    $region113: #{tpu_custom_call.1} parent=1 // pred_fallthru
      _
    // Predicated region
    $region114: #{tpu_custom_call.1} parent=1 // pred_check
      _
    $region115: #{tpu_custom_call.1} parent=1 // pred_check_branch
      %954 = sbr.rel (0) target = $region117
    $region116: #{tpu_custom_call.1} parent=1 // pred_region
      %955 = dma.done [#allocation4], 32
    $region117: #{tpu_custom_call.1} parent=1 // pred_fallthru
      _
    // Predicated region
    $region118: #{tpu_custom_call.1} parent=1 // pred_check
      _
    $region119: #{tpu_custom_call.1} parent=1 // pred_check_branch
      %957 = sbr.rel (0) target = $region121
    $region120: #{tpu_custom_call.1} parent=1 // pred_region
      %958 = dma.done [#allocation25], 32
    $region121: #{tpu_custom_call.1} parent=1 // pred_fallthru
      _
    %959 = vsyncpa [#allocation3], 1
    %960 = vsyncpa [#allocation6], 1
    %961 = vsyncpa [#allocation9], 1
    %962 = vsyncpa [#allocation12], 1
    %963 = vsyncpa [#allocation15], 1
    %964 = vsyncpa [#allocation18], 1
    %965 = vsyncpa [#allocation21], 1
    %966 = vsyncpa [#allocation4], 1
    %967 = vsyncpa [#allocation25], 1

</llo_original>
